<compile_context>
chip_gen: v5e
topology: v5e:2x2
jax: 0.10.0
libtpu: 0.0.40
codegen_flags: <defaults>
</compile_context>

<pallas_src>
import functools

import jax
import jax.numpy as jnp
from jax.experimental import pallas as pl
from jax.experimental.pallas import tpu as pltpu


def _round_up(v, m):
    return (v + m - 1) // m * m


# ----------------------------------------------------------------------------
# Kernel
# ----------------------------------------------------------------------------
def fused_gcn_kernel(adj_hbm, x_ref, w1_ref, b1_ref, w2_ref, b2_ref, out_ref,
                     adj_vmem, adj_sem):
    """out = Â @ relu(Â @ (X@W1) + b1) @ W2 + b2, fully resident in VMEM.

    Â arrives as a raw HBM ref (memory_space=pl.ANY) and is DMA'd once into a
    single-buffered VMEM scratch; the DMA overlaps with the X @ W1 matmul.
    All MXU operands are bf16 with explicit f32 accumulation; bias/ReLU in f32.
    """
    adj_cp = pltpu.make_async_copy(adj_hbm, adj_vmem, adj_sem)
    adj_cp.start()

    # ---- layer 1 (part 1): XW1 = X @ W1, overlapped with the Â DMA ----
    xw1 = jnp.dot(x_ref[...], w1_ref[...],
                  preferred_element_type=jnp.float32)          # f32 [Np, Hp]

    adj_cp.wait()

    # ---- layer 1 (part 2): H = relu(Â @ XW1 + b1) ----
    h = jnp.dot(adj_vmem[...], xw1.astype(jnp.bfloat16),
                preferred_element_type=jnp.float32)            # f32 [Np, Hp]
    h = jnp.maximum(h + b1_ref[...], 0.0)                      # bias + ReLU, f32

    # ---- layer 2: OUT = Â @ (H @ W2) + b2 ----
    hw2 = jnp.dot(h.astype(jnp.bfloat16), w2_ref[...],
                  preferred_element_type=jnp.float32)          # f32 [Np, Op]
    out = jnp.dot(adj_vmem[...], hw2.astype(jnp.bfloat16),
                  preferred_element_type=jnp.float32)          # f32 [Np, Op]
    out_ref[...] = (out + b2_ref[...]).astype(out_ref.dtype)   # lane-dense store


def _vmem_limit_bytes(n_p, fi_p, hd_p, fo_p):
    bf16, f32 = 2, 4
    need = (
        n_p * n_p * bf16                              # Â scratch (single-buffered)
        + 2 * n_p * fi_p * bf16                       # X (pipelined, 2 buffers)
        + 2 * (fi_p * hd_p * bf16 + hd_p * f32)       # W1, b1
        + 2 * (hd_p * fo_p * bf16 + fo_p * f32)       # W2, b2
        + 2 * n_p * fo_p * f32                        # out (2 buffers)
        + n_p * (2 * hd_p + 2 * fo_p) * f32           # f32 intermediates
    )
    # Floor at the conservative v5e default (16 MiB), cap at v7x physical VMEM.
    return int(min(max(2 * need, 16 << 20), 64 << 20))


# ----------------------------------------------------------------------------
# Wrapper: only X is padded per call; everything static is prepared once.
# ----------------------------------------------------------------------------
@functools.partial(jax.jit, static_argnames=("out_channels",))
def gcn_forward(prepared, x, *, out_channels):
    # x = dropout(x) / h = dropout(h) -> identity (eval mode).
    n, f_in = x.shape
    n_p = prepared["adj"].shape[0]
    fi_p, hd_p = prepared["w1"].shape
    fo_p = prepared["w2"].shape[1]

    # Per-call padding of node features only (zero padding is semantics
    # preserving: Â's padded columns are zero, padded weight rows/cols are
    # zero, so padded lanes never leak into real output rows).
    x_p = jnp.zeros((n_p, fi_p), jnp.bfloat16).at[:n, :f_in].set(
        x.astype(jnp.bfloat16))

    out_p = pl.pallas_call(
        fused_gcn_kernel,
        out_shape=jax.ShapeDtypeStruct((n_p, fo_p), jnp.float32),
        grid=(1,),
        in_specs=[
            pl.BlockSpec(memory_space=pl.ANY),              # Â  (bf16, raw HBM ref)
            pl.BlockSpec((n_p, fi_p), lambda i: (0, 0)),    # X  (bf16)
            pl.BlockSpec((fi_p, hd_p), lambda i: (0, 0)),   # W1 (bf16)
            pl.BlockSpec((1, hd_p), lambda i: (0, 0)),      # b1 (f32)
            pl.BlockSpec((hd_p, fo_p), lambda i: (0, 0)),   # W2 (bf16)
            pl.BlockSpec((1, fo_p), lambda i: (0, 0)),      # b2 (f32)
        ],
        out_specs=pl.BlockSpec((n_p, fo_p), lambda i: (0, 0)),
        scratch_shapes=[
            pltpu.VMEM((n_p, n_p), jnp.bfloat16),           # single-buffered Â
            pltpu.SemaphoreType.DMA(()),
        ],
        compiler_params=pltpu.CompilerParams(
            dimension_semantics=("arbitrary",),
            vmem_limit_bytes=_vmem_limit_bytes(n_p, fi_p, hd_p, fo_p)),
    )(prepared["adj"], x_p, prepared["w1"], prepared["b1"],
      prepared["w2"], prepared["b2"])

    return out_p[:n, :out_channels]


# ----------------------------------------------------------------------------
# One-time setup: normalized adjacency (built directly at padded size) and
# padded / bf16-cast weights.  Plain JAX glue, runs once per model/graph.
# ----------------------------------------------------------------------------
def gcn_normalized_adj(edge_index, edge_weight, num_nodes, padded_nodes=None):
    """Dense Â = D^{-1/2}(A + I)D^{-1/2}, A[dst, src] = edge_weight.

    If `padded_nodes` is given, Â is built directly at the padded size with the
    extra rows/columns exactly zero (padded nodes have zero degree).
    """
    src, dst = edge_index[0], edge_index[1]
    if edge_weight is None:
        edge_weight = jnp.ones(src.shape[0], dtype=jnp.float32)
    n_p = num_nodes if padded_nodes is None else padded_nodes
    a = jnp.zeros((n_p, n_p), jnp.float32)
    a = a.at[dst, src].add(edge_weight.astype(jnp.float32))
    # Self-loops (fill value 1.0) only on real nodes.
    diag = (jnp.arange(n_p) < num_nodes).astype(jnp.float32)
    a = a + jnp.diag(diag)
    deg = a.sum(axis=1)
    dinv_sqrt = jnp.where(deg > 0.0, jax.lax.rsqrt(deg), 0.0)
    return a * dinv_sqrt[:, None] * dinv_sqrt[None, :]


def prepare_gcn_statics(params, edge_index, edge_weight, num_nodes):
    """Hoisted, one-time padding + bf16 casts of Â and the weights."""
    f_in, hid = params["w1"].shape
    f_out = params["w2"].shape[1]

    n_p = _round_up(max(num_nodes, 128), 128)   # lane-dense Â / full-K MXU feed
    fi_p = _round_up(f_in, 128)
    hd_p = _round_up(hid, 128)
    fo_p = _round_up(f_out, 128)

    adj_p = gcn_normalized_adj(edge_index, edge_weight, num_nodes,
                               padded_nodes=n_p).astype(jnp.bfloat16)
    w1_p = jnp.zeros((fi_p, hd_p), jnp.bfloat16).at[:f_in, :hid].set(
        params["w1"].astype(jnp.bfloat16))
    b1_p = jnp.zeros((1, hd_p), jnp.float32).at[:, :hid].set(params["b1"])
    w2_p = jnp.zeros((hd_p, fo_p), jnp.bfloat16).at[:hid, :f_out].set(
        params["w2"].astype(jnp.bfloat16))
    b2_p = jnp.zeros((1, fo_p), jnp.float32).at[:, :f_out].set(params["b2"])

    return {"adj": adj_p, "w1": w1_p, "b1": b1_p, "w2": w2_p, "b2": b2_p}


def init_gcn_params(key, in_channels, hidden_channels, out_channels):
    k1, k2 = jax.random.split(key)

    def glorot(k, fan_in, fan_out):
        limit = jnp.sqrt(6.0 / (fan_in + fan_out))
        return jax.random.uniform(k, (fan_in, fan_out), jnp.float32, -limit, limit)

    return {
        "w1": glorot(k1, in_channels, hidden_channels),
        "b1": jnp.zeros((1, hidden_channels), jnp.float32),
        "w2": glorot(k2, hidden_channels, out_channels),
        "b2": jnp.zeros((1, out_channels), jnp.float32),
    }


def gcn_reference(params, x, adj):
    """Pure-JAX reference replicating the kernel's bf16 cast points."""
    f32 = jnp.float32
    adj_b = adj.astype(jnp.bfloat16).astype(f32)
    x_b = x.astype(jnp.bfloat16).astype(f32)
    w1_b = params["w1"].astype(jnp.bfloat16).astype(f32)
    w2_b = params["w2"].astype(jnp.bfloat16).astype(f32)
    xw1 = (x_b @ w1_b).astype(jnp.bfloat16).astype(f32)
    h = jnp.maximum(adj_b @ xw1 + params["b1"], 0.0)
    hw2 = (h.astype(jnp.bfloat16).astype(f32) @ w2_b).astype(jnp.bfloat16).astype(f32)
    return adj_b @ hw2 + params["b2"]


if __name__ == "__main__":
    key = jax.random.PRNGKey(0)
    k_x, k_p = jax.random.split(key)

    num_nodes = 16
    in_channels, hidden_channels, out_channels = 16, 32, 8

    # Deterministic node features.
    x = jax.random.normal(k_x, (num_nodes, in_channels), jnp.float32)

    # Deterministic small graph: a directed ring plus a few chords.
    src = jnp.array(list(range(num_nodes)) + [0, 3, 7, 11], dtype=jnp.int32)
    dst = jnp.array([(i + 1) % num_nodes for i in range(num_nodes)] + [8, 12, 2, 5],
                    dtype=jnp.int32)
    edge_index = jnp.stack([src, dst], axis=0)  # [2, E]
    edge_weight = None

    params = init_gcn_params(k_p, in_channels, hidden_channels, out_channels)

    # One-time, hoisted out of the per-call path.
    prepared = prepare_gcn_statics(params, edge_index, edge_weight, num_nodes)
    prepared = jax.tree_util.tree_map(jax.block_until_ready, prepared)

    out = gcn_forward(prepared, x, out_channels=out_channels)
    out = jax.block_until_ready(out)

    assert out.shape == (num_nodes, out_channels)
    assert out.dtype == jnp.float32
    assert bool(jnp.all(jnp.isfinite(out)))

    adj_ref = gcn_normalized_adj(edge_index, edge_weight, num_nodes)
    ref = gcn_reference(params, x, adj_ref)
    assert bool(jnp.allclose(out, ref, rtol=2e-2, atol=2e-2)), (
        f"max abs diff {float(jnp.max(jnp.abs(out - ref)))}")

    print("KERNEL_OK")
</pallas_src>

<mosaic_0001>
module attributes {stable_mosaic.version = 11 : i64} {
  func.func @fused_gcn_kernel(%arg0: i32, %arg1: memref<128x128xbf16, #tpu.memory_space<any>>, %arg2: memref<128x128xbf16, #tpu.memory_space<vmem>>, %arg3: memref<128x128xbf16, #tpu.memory_space<vmem>>, %arg4: memref<1x128xf32, #tpu.memory_space<vmem>>, %arg5: memref<128x128xbf16, #tpu.memory_space<vmem>>, %arg6: memref<1x128xf32, #tpu.memory_space<vmem>>, %arg7: memref<128x128xf32, #tpu.memory_space<vmem>>, %arg8: memref<128x128xbf16, #tpu.memory_space<vmem>>, %arg9: memref<!tpu.dma_semaphore, #tpu.memory_space<semaphore_mem>>) attributes {dimension_semantics = [#tpu.dimension_semantics<arbitrary>], iteration_bounds = array<i64: 1>, scalar_prefetch = 0 : i64, scratch_operands = 2 : i64, tpu.core_type = #tpu.core_type<tc>, window_params = [{}, {pipeline_mode = #tpu.pipeline_mode<synchronous>, transform_indices = @transform_1, window_bounds = array<i64: 128, 128>}, {pipeline_mode = #tpu.pipeline_mode<synchronous>, transform_indices = @transform_2, window_bounds = array<i64: 128, 128>}, {pipeline_mode = #tpu.pipeline_mode<synchronous>, transform_indices = @transform_3, window_bounds = array<i64: 1, 128>}, {pipeline_mode = #tpu.pipeline_mode<synchronous>, transform_indices = @transform_4, window_bounds = array<i64: 128, 128>}, {pipeline_mode = #tpu.pipeline_mode<synchronous>, transform_indices = @transform_5, window_bounds = array<i64: 1, 128>}, {pipeline_mode = #tpu.pipeline_mode<synchronous>, transform_indices = @transform_6, window_bounds = array<i64: 128, 128>}]} {
    tpu.enqueue_dma source(%arg1 : memref<128x128xbf16, #tpu.memory_space<any>>) target(%arg8 : memref<128x128xbf16, #tpu.memory_space<vmem>>) target_semaphore(%arg9 : memref<!tpu.dma_semaphore, #tpu.memory_space<semaphore_mem>>)
    %c0 = arith.constant 0 : index
    %c0_0 = arith.constant 0 : index
    %0 = vector.load %arg2[%c0, %c0_0] : memref<128x128xbf16, #tpu.memory_space<vmem>>, vector<128x128xbf16>
    %c0_1 = arith.constant 0 : index
    %c0_2 = arith.constant 0 : index
    %1 = vector.load %arg3[%c0_1, %c0_2] : memref<128x128xbf16, #tpu.memory_space<vmem>>, vector<128x128xbf16>
    %cst = arith.constant dense<0.000000e+00> : vector<128x128xf32>
    %2 = tpu.matmul %0, %1, %cst {dimension_numbers = #tpu.dot_dimension_numbers<[1], [0], [0], [1], [0, 0, 1, 1], [], []>} : vector<128x128xbf16>, vector<128x128xbf16>, vector<128x128xf32> -> vector<128x128xf32>
    tpu.wait_dma2 semaphore(%arg9 : memref<!tpu.dma_semaphore, #tpu.memory_space<semaphore_mem>>) src(%arg1 : memref<128x128xbf16, #tpu.memory_space<any>>) dst(%arg8 : memref<128x128xbf16, #tpu.memory_space<vmem>>)
    %c0_3 = arith.constant 0 : index
    %c0_4 = arith.constant 0 : index
    %3 = vector.load %arg8[%c0_3, %c0_4] : memref<128x128xbf16, #tpu.memory_space<vmem>>, vector<128x128xbf16>
    %4 = arith.truncf %2 : vector<128x128xf32> to vector<128x128xbf16>
    %cst_5 = arith.constant dense<0.000000e+00> : vector<128x128xf32>
    %5 = tpu.matmul %3, %4, %cst_5 {dimension_numbers = #tpu.dot_dimension_numbers<[1], [0], [0], [1], [0, 0, 1, 1], [], []>} : vector<128x128xbf16>, vector<128x128xbf16>, vector<128x128xf32> -> vector<128x128xf32>
    %c0_6 = arith.constant 0 : index
    %c0_7 = arith.constant 0 : index
    %6 = vector.load %arg4[%c0_6, %c0_7] : memref<1x128xf32, #tpu.memory_space<vmem>>, vector<1x128xf32>
    %7 = vector.broadcast %6 : vector<1x128xf32> to vector<128x128xf32>
    %8 = arith.addf %5, %7 : vector<128x128xf32>
    %cst_8 = arith.constant 0.000000e+00 : f32
    %9 = vector.broadcast %cst_8 : f32 to vector<128x128xf32>
    %10 = arith.maximumf %8, %9 : vector<128x128xf32>
    %11 = arith.truncf %10 : vector<128x128xf32> to vector<128x128xbf16>
    %c0_9 = arith.constant 0 : index
    %c0_10 = arith.constant 0 : index
    %12 = vector.load %arg5[%c0_9, %c0_10] : memref<128x128xbf16, #tpu.memory_space<vmem>>, vector<128x128xbf16>
    %cst_11 = arith.constant dense<0.000000e+00> : vector<128x128xf32>
    %13 = tpu.matmul %11, %12, %cst_11 {dimension_numbers = #tpu.dot_dimension_numbers<[1], [0], [0], [1], [0, 0, 1, 1], [], []>} : vector<128x128xbf16>, vector<128x128xbf16>, vector<128x128xf32> -> vector<128x128xf32>
    %c0_12 = arith.constant 0 : index
    %c0_13 = arith.constant 0 : index
    %14 = vector.load %arg8[%c0_12, %c0_13] : memref<128x128xbf16, #tpu.memory_space<vmem>>, vector<128x128xbf16>
    %15 = arith.truncf %13 : vector<128x128xf32> to vector<128x128xbf16>
    %cst_14 = arith.constant dense<0.000000e+00> : vector<128x128xf32>
    %16 = tpu.matmul %14, %15, %cst_14 {dimension_numbers = #tpu.dot_dimension_numbers<[1], [0], [0], [1], [0, 0, 1, 1], [], []>} : vector<128x128xbf16>, vector<128x128xbf16>, vector<128x128xf32> -> vector<128x128xf32>
    %c0_15 = arith.constant 0 : index
    %c0_16 = arith.constant 0 : index
    %17 = vector.load %arg6[%c0_15, %c0_16] : memref<1x128xf32, #tpu.memory_space<vmem>>, vector<1x128xf32>
    %18 = vector.broadcast %17 : vector<1x128xf32> to vector<128x128xf32>
    %19 = arith.addf %16, %18 : vector<128x128xf32>
    %c0_17 = arith.constant 0 : index
    %c0_18 = arith.constant 0 : index
    %20 = vector.load %arg7[%c0_17, %c0_18] : memref<128x128xf32, #tpu.memory_space<vmem>>, vector<128x128xf32>
    tpu.vector_store %arg7[%c0_17, %c0_18], %19 {strides = array<i32>} : memref<128x128xf32, #tpu.memory_space<vmem>>, vector<128x128xf32>,
    return
  }
  func.func @transform_1(%arg0: i32) -> (i32, i32) {
    %c0_i32 = arith.constant 0 : i32
    %c0_i32_0 = arith.constant 0 : i32
    %c0_i32_1 = arith.constant 0 : i32
    return %c0_i32, %c0_i32_0 : i32, i32
  }
  func.func @transform_2(%arg0: i32) -> (i32, i32) {
    %c0_i32 = arith.constant 0 : i32
    %c0_i32_0 = arith.constant 0 : i32
    %c0_i32_1 = arith.constant 0 : i32
    return %c0_i32, %c0_i32_0 : i32, i32
  }
  func.func @transform_3(%arg0: i32) -> (i32, i32) {
    %c0_i32 = arith.constant 0 : i32
    %c0_i32_0 = arith.constant 0 : i32
    %c0_i32_1 = arith.constant 0 : i32
    return %c0_i32, %c0_i32_0 : i32, i32
  }
  func.func @transform_4(%arg0: i32) -> (i32, i32) {
    %c0_i32 = arith.constant 0 : i32
    %c0_i32_0 = arith.constant 0 : i32
    %c0_i32_1 = arith.constant 0 : i32
    return %c0_i32, %c0_i32_0 : i32, i32
  }
  func.func @transform_5(%arg0: i32) -> (i32, i32) {
    %c0_i32 = arith.constant 0 : i32
    %c0_i32_0 = arith.constant 0 : i32
    %c0_i32_1 = arith.constant 0 : i32
    return %c0_i32, %c0_i32_0 : i32, i32
  }
  func.func @transform_6(%arg0: i32) -> (i32, i32) {
    %c0_i32 = arith.constant 0 : i32
    %c0_i32_0 = arith.constant 0 : i32
    %c0_i32_1 = arith.constant 0 : i32
    return %c0_i32, %c0_i32_0 : i32, i32
  }
}

</mosaic_0001>

<llo_original>
// kernel: gcn_forward.1
$region0: #{gcn_forward.1}
  #allocation0 [shape = 'u32[]', space=smem, size = 0x4, offset = 0x4, fixed_abs, tag = 'smem constant byte address 0x4 - core index']
  #allocation1 [shape = 'u32[72,128]{1,0:T(1,128)}', space=vmem, size = 0x9000, scoped, tag = 'internal scratch']
  #allocation2 [shape = 'bf16[128,128]{1,0:T(8,128)(2,1)}', space=vmem, size = 0x8000, scoped, tag = 'scratch operand']
  #allocation3 [shape = 's32[1]{0}', space=sflag, size = 0x4, scoped, tag = 'scratch operand']
  #allocation8 [shape = 's32[]', space=sflag, size = 0x4, offset = 0, fixed_abs, tag = 'sflag constant byte address 0x0 - dummy sync flag']
  %s0 = inlined_call_operand.vmem [shape: bf16[128,128], index: 0, kind: input, shape index: {}]
  %s1 = inlined_call_operand.vmem [shape: bf16[128,128], index: 1, kind: input, shape index: {}]
  %s2 = inlined_call_operand.hbm [shape: bf16[128,128], index: 2, kind: input, shape index: {}]
  %s3 = inlined_call_operand.vmem [shape: f32[1,128], index: 3, kind: input, shape index: {}]
  %s4 = inlined_call_operand.hbm [shape: bf16[128,128], index: 4, kind: input, shape index: {}]
  %s5 = inlined_call_operand.vmem [shape: f32[1,128], index: 5, kind: input, shape index: {}]
  %s6 = inlined_call_operand.vmem [shape: f32[128,128], index: 6, kind: output, shape index: {}]
  %s7 = sld [smem:[#allocation0]]
  $region57: #{gcn_forward.1} parent=0
    _
  %s9 = ssub.s32 1, %s7
  %s10 = scalar_select 0, %s9, %s7
  $region1: #{gcn_forward.1} parent=0
    #allocation4 [shape = 'u8[32768]{0}', space=vmem, size = 0x8000, scoped, tag = 'input window, operand 2, single buffered']
    #allocation5 [shape = 's32[1]{0}', space=sflag, size = 0x4, scoped, tag = 'scoped memory for gcn_forward.1']
    #allocation6 [shape = 'u8[32768]{0}', space=vmem, size = 0x8000, scoped, tag = 'input window, operand 4, single buffered']
    #allocation7 [shape = 's32[1]{0}', space=sflag, size = 0x4, scoped, tag = 'scoped memory for gcn_forward.1']
    %11 = vsyncpa [#allocation5], 0
    %12 = vsyncpa [#allocation7], 0
    // Predicated region
    $region2: #{gcn_forward.1} parent=1 // pred_check
      _
    $region3: #{gcn_forward.1} parent=1 // pred_check_branch
      %14 = sbr.rel (0) target = $region5
    $region4: #{gcn_forward.1} parent=1 // pred_region
      _
    $region5: #{gcn_forward.1} parent=1 // pred_fallthru
      _
    // Predicated region
    $region6: #{gcn_forward.1} parent=1 // pred_check
      _
    $region7: #{gcn_forward.1} parent=1 // pred_check_branch
      %16 = sbr.rel (0) target = $region9
    $region8: #{gcn_forward.1} parent=1 // pred_region
      %18 = vsyncadd [#allocation5], 0
      %s19 = sshll.u32 %s2, 4
      %s20 = int_to_ptr.hbm [resolvable:$true] %s19
      %s21 = sshll.u32 [#allocation4], 4
      %s22 = int_to_ptr.vmem [resolvable:$true] %s21
      %27 = dma.hbm_to_vmem [thread:$0]  %s20, 1024, %s22, [#allocation5], 64, 64, 4
    $region9: #{gcn_forward.1} parent=1 // pred_fallthru
      _
    // Predicated region
    $region10: #{gcn_forward.1} parent=1 // pred_check
      _
    $region11: #{gcn_forward.1} parent=1 // pred_check_branch
      %29 = sbr.rel (0) target = $region13
    $region12: #{gcn_forward.1} parent=1 // pred_region
      _
    $region13: #{gcn_forward.1} parent=1 // pred_fallthru
      _
    // Predicated region
    $region14: #{gcn_forward.1} parent=1 // pred_check
      _
    $region15: #{gcn_forward.1} parent=1 // pred_check_branch
      %31 = sbr.rel (0) target = $region17
    $region16: #{gcn_forward.1} parent=1 // pred_region
      %33 = vsyncadd [#allocation7], 0
      %s34 = sshll.u32 %s4, 4
      %s35 = int_to_ptr.hbm [resolvable:$true] %s34
      %s36 = sshll.u32 [#allocation6], 4
      %s37 = int_to_ptr.vmem [resolvable:$true] %s36
      %42 = dma.hbm_to_vmem [thread:$0]  %s35, 1024, %s37, [#allocation7], 64, 64, 4
    $region17: #{gcn_forward.1} parent=1 // pred_fallthru
      _
    // Predicated region
    $region18: #{gcn_forward.1} parent=1 // pred_check
      _
    $region19: #{gcn_forward.1} parent=1 // pred_check_branch
      %44 = sbr.rel (0) target = $region21
    $region20: #{gcn_forward.1} parent=1 // pred_region
      _
    $region21: #{gcn_forward.1} parent=1 // pred_fallthru
      _
    // Predicated region
    $region22: #{gcn_forward.1} parent=1 // pred_check
      _
    $region23: #{gcn_forward.1} parent=1 // pred_check_branch
      %46 = sbr.rel (0) target = $region25
    $region24: #{gcn_forward.1} parent=1 // pred_region
      %48 = dma.done [#allocation5], 1024
    $region25: #{gcn_forward.1} parent=1 // pred_fallthru
      _
    // Predicated region
    $region26: #{gcn_forward.1} parent=1 // pred_check
      _
    $region27: #{gcn_forward.1} parent=1 // pred_check_branch
      %50 = sbr.rel (0) target = $region29
    $region28: #{gcn_forward.1} parent=1 // pred_region
      %52 = dma.done [#allocation7], 1024
    $region29: #{gcn_forward.1} parent=1 // pred_fallthru
      _
    // Predicated region
    $region30: #{gcn_forward.1} parent=1 // pred_check
      _
    $region31: #{gcn_forward.1} parent=1 // pred_check_branch
      %54 = sbr.rel (0) target = $region33
    $region32: #{gcn_forward.1} parent=1 // pred_region
      loop: start=0, step=1, limit=1
      $region34: #{gcn_forward.1} parent=32 // loop_pre_header
        _
      $region35: #{gcn_forward.1} parent=32 // loop_header
        %s56 = sphi 0, %s60
        %p57 = scmp.ge.s32.totalorder %s56, 1
        %s61 = sphi %s0, %s0
        %s62 = sphi [#allocation2], [#allocation2]
      $region36: #{gcn_forward.1} parent=32 // loop_header_branch
        %59 = sbr.rel (%p57) target = $region40
      $region37: #{gcn_forward.1} parent=32 // loop_body
        %v63 = vld [vmem:[%s61] sm:$0xff]
        %64 = vst [vmem:[%s62] sm:$0xff] %v63
        %v65 = vld [vmem:[%s61 + $0x8] sm:$0xff]
        %66 = vst [vmem:[%s62 + $0x8] sm:$0xff] %v65
        %v67 = vld [vmem:[%s61 + $0x10] sm:$0xff]
        %68 = vst [vmem:[%s62 + $0x10] sm:$0xff] %v67
        %v69 = vld [vmem:[%s61 + $0x18] sm:$0xff]
        %70 = vst [vmem:[%s62 + $0x18] sm:$0xff] %v69
        %v71 = vld [vmem:[%s61 + $0x20] sm:$0xff]
        %72 = vst [vmem:[%s62 + $0x20] sm:$0xff] %v71
        %v73 = vld [vmem:[%s61 + $0x28] sm:$0xff]
        %74 = vst [vmem:[%s62 + $0x28] sm:$0xff] %v73
        %v75 = vld [vmem:[%s61 + $0x30] sm:$0xff]
        %76 = vst [vmem:[%s62 + $0x30] sm:$0xff] %v75
        %v77 = vld [vmem:[%s61 + $0x38] sm:$0xff]
        %78 = vst [vmem:[%s62 + $0x38] sm:$0xff] %v77
      $region38: #{gcn_forward.1} parent=32 // loop_footer
        %s60 = sadd.s32 1, %s56
      $region39: #{gcn_forward.1} parent=32 // loop_footer_branch
        %55 = sbr.rel target = $region35
      $region40: #{gcn_forward.1} parent=32 // loop_exit
        _
    $region33: #{gcn_forward.1} parent=1 // pred_fallthru
      _
    // Predicated region
    $region41: #{gcn_forward.1} parent=1 // pred_check
      _
    $region42: #{gcn_forward.1} parent=1 // pred_check_branch
      %80 = sbr.rel target = $region44
    $region43: #{gcn_forward.1} parent=1 // pred_region
      _
    $region44: #{gcn_forward.1} parent=1 // pred_fallthru
      _
    // Predicated region
    $region45: #{gcn_forward.1} parent=1 // pred_check
      _
    $region46: #{gcn_forward.1} parent=1 // pred_check_branch
      %83 = sbr.rel (0) target = $region48
    $region47: #{gcn_forward.1} parent=1 // pred_region
      %84 = vsyncadd [#allocation3], 1024
    $region48: #{gcn_forward.1} parent=1 // pred_fallthru
      _
    %v85 = vld [vmem:[%s1] sm:$0xf]
    %v86 = vld [vmem:[%s1 + $0x4] sm:$0xf]
    %v87 = vld [vmem:[%s1 + $0x8] sm:$0xf]
    %v88 = vld [vmem:[%s1 + $0xc] sm:$0xf]
    %v89 = vld [vmem:[%s1 + $0x10] sm:$0xf]
    %v90 = vld [vmem:[%s1 + $0x14] sm:$0xf]
    %v91 = vld [vmem:[%s1 + $0x18] sm:$0xf]
    %v92 = vld [vmem:[%s1 + $0x1c] sm:$0xf]
    %v93 = vld [vmem:[%s1 + $0x20] sm:$0xf]
    %v94 = vld [vmem:[%s1 + $0x24] sm:$0xf]
    %v95 = vld [vmem:[%s1 + $0x28] sm:$0xf]
    %v96 = vld [vmem:[%s1 + $0x2c] sm:$0xf]
    %v97 = vld [vmem:[%s1 + $0x30] sm:$0xf]
    %v98 = vld [vmem:[%s1 + $0x34] sm:$0xf]
    %v99 = vld [vmem:[%s1 + $0x38] sm:$0xf]
    %v100 = vld [vmem:[%s1 + $0x3c] sm:$0xf]
    %v101 = vld [vmem:[#allocation4] sm:$0xf]
    %v102 = vld [vmem:[#allocation4 + $0x4] sm:$0xf]
    %v103 = vld [vmem:[#allocation4 + $0x8] sm:$0xf]
    %v104 = vld [vmem:[#allocation4 + $0xc] sm:$0xf]
    %v105 = vld [vmem:[#allocation4 + $0x10] sm:$0xf]
    %v106 = vld [vmem:[#allocation4 + $0x14] sm:$0xf]
    %v107 = vld [vmem:[#allocation4 + $0x18] sm:$0xf]
    %v108 = vld [vmem:[#allocation4 + $0x1c] sm:$0xf]
    %v109 = vld [vmem:[#allocation4 + $0x20] sm:$0xf]
    %v110 = vld [vmem:[#allocation4 + $0x24] sm:$0xf]
    %v111 = vld [vmem:[#allocation4 + $0x28] sm:$0xf]
    %v112 = vld [vmem:[#allocation4 + $0x2c] sm:$0xf]
    %v113 = vld [vmem:[#allocation4 + $0x30] sm:$0xf]
    %v114 = vld [vmem:[#allocation4 + $0x34] sm:$0xf]
    %v115 = vld [vmem:[#allocation4 + $0x38] sm:$0xf]
    %v116 = vld [vmem:[#allocation4 + $0x3c] sm:$0xf]
    %v133 = vunpack.c.l.b16 %v85
    %v134 = vunpack.c.l.b16 %v86
    %v135 = vunpack.c.l.b16 %v87
    %v136 = vunpack.c.l.b16 %v88
    %v137 = vunpack.c.l.b16 %v89
    %v138 = vunpack.c.l.b16 %v90
    %v139 = vunpack.c.l.b16 %v91
    %v140 = vunpack.c.l.b16 %v92
    %v141 = vunpack.c.l.b16 %v93
    %v142 = vunpack.c.l.b16 %v94
    %v143 = vunpack.c.l.b16 %v95
    %v144 = vunpack.c.l.b16 %v96
    %v145 = vunpack.c.l.b16 %v97
    %v146 = vunpack.c.l.b16 %v98
    %v147 = vunpack.c.l.b16 %v99
    %v148 = vunpack.c.l.b16 %v100
    %v149 = vpack.c.b16 %v134, %v133
    %v150 = vpack.c.b16 %v136, %v135
    %v151 = vpack.c.b16 %v138, %v137
    %v152 = vpack.c.b16 %v140, %v139
    %v153 = vpack.c.b16 %v142, %v141
    %v154 = vpack.c.b16 %v144, %v143
    %v155 = vpack.c.b16 %v146, %v145
    %v156 = vpack.c.b16 %v148, %v147
    %v181 = vunpack.c.l.b16 %v101
    %v182 = vunpack.c.l.b16 %v102
    %v183 = vunpack.c.l.b16 %v103
    %v184 = vunpack.c.l.b16 %v104
    %v185 = vunpack.c.l.b16 %v105
    %v186 = vunpack.c.l.b16 %v106
    %v187 = vunpack.c.l.b16 %v107
    %v188 = vunpack.c.l.b16 %v108
    %v189 = vunpack.c.l.b16 %v109
    %v190 = vunpack.c.l.b16 %v110
    %v191 = vunpack.c.l.b16 %v111
    %v192 = vunpack.c.l.b16 %v112
    %v193 = vunpack.c.l.b16 %v113
    %v194 = vunpack.c.l.b16 %v114
    %v195 = vunpack.c.l.b16 %v115
    %v196 = vunpack.c.l.b16 %v116
    %v197 = vpack.c.b16 %v182, %v181
    %v198 = vpack.c.b16 %v184, %v183
    %v199 = vpack.c.b16 %v186, %v185
    %v200 = vpack.c.b16 %v188, %v187
    %v201 = vpack.c.b16 %v190, %v189
    %v202 = vpack.c.b16 %v192, %v191
    %v203 = vpack.c.b16 %v194, %v193
    %v204 = vpack.c.b16 %v196, %v195
    %213 = vmatpush.bf16.msra.mxu0 %v204
    %214 = vmatpush.bf16.msra.mxu0 %v203
    %215 = vmatpush.bf16.msra.mxu0 %v202
    %216 = vmatpush.bf16.msra.mxu0 %v201
    %217 = vmatpush.bf16.msra.mxu0 %v200
    %218 = vmatpush.bf16.msra.mxu0 %v199
    %219 = vmatpush.bf16.msra.mxu0 %v198
    %220 = vmatpush.bf16.msra.mxu0 %v197
    %221 = vmatmul.bf16.gmra.mxu0 %v149
    %v222 = vpop.f32.mrf.mxu0
    %v223 = vadd.f32 0.0, %v222
    %v224 = vpop.f32.mrf.mxu0
    %v225 = vadd.f32 0.0, %v224
    %226 = vmatmul.bf16.gmra.mxu0 %v150
    %v227 = vpop.f32.mrf.mxu0
    %v228 = vadd.f32 0.0, %v227
    %v229 = vpop.f32.mrf.mxu0
    %v230 = vadd.f32 0.0, %v229
    %231 = vmatmul.bf16.gmra.mxu0 %v151
    %v232 = vpop.f32.mrf.mxu0
    %v233 = vadd.f32 0.0, %v232
    %v234 = vpop.f32.mrf.mxu0
    %v235 = vadd.f32 0.0, %v234
    %236 = vmatmul.bf16.gmra.mxu0 %v152
    %v237 = vpop.f32.mrf.mxu0
    %v238 = vadd.f32 0.0, %v237
    %v239 = vpop.f32.mrf.mxu0
    %v240 = vadd.f32 0.0, %v239
    %241 = vmatmul.bf16.gmra.mxu0 %v153
    %v242 = vpop.f32.mrf.mxu0
    %v243 = vadd.f32 0.0, %v242
    %v244 = vpop.f32.mrf.mxu0
    %v245 = vadd.f32 0.0, %v244
    %246 = vmatmul.bf16.gmra.mxu0 %v154
    %v247 = vpop.f32.mrf.mxu0
    %v248 = vadd.f32 0.0, %v247
    %v249 = vpop.f32.mrf.mxu0
    %v250 = vadd.f32 0.0, %v249
    %251 = vmatmul.bf16.gmra.mxu0 %v155
    %v252 = vpop.f32.mrf.mxu0
    %v253 = vadd.f32 0.0, %v252
    %v254 = vpop.f32.mrf.mxu0
    %v255 = vadd.f32 0.0, %v254
    %256 = vmatmul.bf16.gmra.mxu0 %v156
    %v257 = vpop.f32.mrf.mxu0
    %v258 = vadd.f32 0.0, %v257
    %v259 = vpop.f32.mrf.mxu0
    %v260 = vadd.f32 0.0, %v259
    %261 = vdwg.mxu0
    %s262 = smul.u32 4, 16
    %s263 = smul.u32 %s262, 1
    %s264 = sshll.u32 %s263, 4
    %265 = dma.done [#allocation3], %s264
    %v266 = vld [vmem:[#allocation2] sm:$0xf]
    %v267 = vld [vmem:[#allocation2 + $0x4] sm:$0xf]
    %v268 = vld [vmem:[#allocation2 + $0x8] sm:$0xf]
    %v269 = vld [vmem:[#allocation2 + $0xc] sm:$0xf]
    %v270 = vld [vmem:[#allocation2 + $0x10] sm:$0xf]
    %v271 = vld [vmem:[#allocation2 + $0x14] sm:$0xf]
    %v272 = vld [vmem:[#allocation2 + $0x18] sm:$0xf]
    %v273 = vld [vmem:[#allocation2 + $0x1c] sm:$0xf]
    %v274 = vld [vmem:[#allocation2 + $0x20] sm:$0xf]
    %v275 = vld [vmem:[#allocation2 + $0x24] sm:$0xf]
    %v276 = vld [vmem:[#allocation2 + $0x28] sm:$0xf]
    %v277 = vld [vmem:[#allocation2 + $0x2c] sm:$0xf]
    %v278 = vld [vmem:[#allocation2 + $0x30] sm:$0xf]
    %v279 = vld [vmem:[#allocation2 + $0x34] sm:$0xf]
    %v280 = vld [vmem:[#allocation2 + $0x38] sm:$0xf]
    %v281 = vld [vmem:[#allocation2 + $0x3c] sm:$0xf]
    %v282 = vpack.c.bf16 %v225, %v223
    %v283 = vpack.c.bf16 %v230, %v228
    %v284 = vpack.c.bf16 %v235, %v233
    %v285 = vpack.c.bf16 %v240, %v238
    %v286 = vpack.c.bf16 %v245, %v243
    %v287 = vpack.c.bf16 %v250, %v248
    %v288 = vpack.c.bf16 %v255, %v253
    %v289 = vpack.c.bf16 %v260, %v258
    %v290 = vld [vmem:[%s3] sm:$0x1]
    %v292 = vperm.slane %v290, 0
    %v310 = vunpack.c.l.b16 %v266
    %v311 = vunpack.c.l.b16 %v267
    %v312 = vunpack.c.l.b16 %v268
    %v313 = vunpack.c.l.b16 %v269
    %v314 = vunpack.c.l.b16 %v270
    %v315 = vunpack.c.l.b16 %v271
    %v316 = vunpack.c.l.b16 %v272
    %v317 = vunpack.c.l.b16 %v273
    %v318 = vunpack.c.l.b16 %v274
    %v319 = vunpack.c.l.b16 %v275
    %v320 = vunpack.c.l.b16 %v276
    %v321 = vunpack.c.l.b16 %v277
    %v322 = vunpack.c.l.b16 %v278
    %v323 = vunpack.c.l.b16 %v279
    %v324 = vunpack.c.l.b16 %v280
    %v325 = vunpack.c.l.b16 %v281
    %v326 = vpack.c.b16 %v311, %v310
    %v327 = vpack.c.b16 %v313, %v312
    %v328 = vpack.c.b16 %v315, %v314
    %v329 = vpack.c.b16 %v317, %v316
    %v330 = vpack.c.b16 %v319, %v318
    %v331 = vpack.c.b16 %v321, %v320
    %v332 = vpack.c.b16 %v323, %v322
    %v333 = vpack.c.b16 %v325, %v324
    %342 = vmatpush.bf16.msra.mxu0 %v289
    %343 = vmatpush.bf16.msra.mxu0 %v288
    %344 = vmatpush.bf16.msra.mxu0 %v287
    %345 = vmatpush.bf16.msra.mxu0 %v286
    %346 = vmatpush.bf16.msra.mxu0 %v285
    %347 = vmatpush.bf16.msra.mxu0 %v284
    %348 = vmatpush.bf16.msra.mxu0 %v283
    %349 = vmatpush.bf16.msra.mxu0 %v282
    %350 = vmatmul.bf16.gmra.mxu0 %v326
    %v351 = vpop.f32.mrf.mxu0
    %v352 = vadd.f32 %v292, %v351
    %v353 = vpop.f32.mrf.mxu0
    %v354 = vadd.f32 %v292, %v353
    %355 = vmatmul.bf16.gmra.mxu0 %v327
    %v356 = vpop.f32.mrf.mxu0
    %v357 = vadd.f32 %v292, %v356
    %v358 = vpop.f32.mrf.mxu0
    %v359 = vadd.f32 %v292, %v358
    %360 = vmatmul.bf16.gmra.mxu0 %v328
    %v361 = vpop.f32.mrf.mxu0
    %v362 = vadd.f32 %v292, %v361
    %v363 = vpop.f32.mrf.mxu0
    %v364 = vadd.f32 %v292, %v363
    %365 = vmatmul.bf16.gmra.mxu0 %v329
    %v366 = vpop.f32.mrf.mxu0
    %v367 = vadd.f32 %v292, %v366
    %v368 = vpop.f32.mrf.mxu0
    %v369 = vadd.f32 %v292, %v368
    %370 = vmatmul.bf16.gmra.mxu0 %v330
    %v371 = vpop.f32.mrf.mxu0
    %v372 = vadd.f32 %v292, %v371
    %v373 = vpop.f32.mrf.mxu0
    %v374 = vadd.f32 %v292, %v373
    %375 = vmatmul.bf16.gmra.mxu0 %v331
    %v376 = vpop.f32.mrf.mxu0
    %v377 = vadd.f32 %v292, %v376
    %v378 = vpop.f32.mrf.mxu0
    %v379 = vadd.f32 %v292, %v378
    %380 = vmatmul.bf16.gmra.mxu0 %v332
    %v381 = vpop.f32.mrf.mxu0
    %v382 = vadd.f32 %v292, %v381
    %v383 = vpop.f32.mrf.mxu0
    %v384 = vadd.f32 %v292, %v383
    %385 = vmatmul.bf16.gmra.mxu0 %v333
    %v386 = vpop.f32.mrf.mxu0
    %v387 = vadd.f32 %v292, %v386
    %v388 = vpop.f32.mrf.mxu0
    %v389 = vadd.f32 %v292, %v388
    %390 = vdwg.mxu0
    %v391 = vmax.f32 %v352, 0.0
    %v392 = vmax.f32 %v354, 0.0
    %v393 = vmax.f32 %v357, 0.0
    %v394 = vmax.f32 %v359, 0.0
    %v395 = vmax.f32 %v362, 0.0
    %v396 = vmax.f32 %v364, 0.0
    %v397 = vmax.f32 %v367, 0.0
    %v398 = vmax.f32 %v369, 0.0
    %v399 = vmax.f32 %v372, 0.0
    %v400 = vmax.f32 %v374, 0.0
    %v401 = vmax.f32 %v377, 0.0
    %v402 = vmax.f32 %v379, 0.0
    %v403 = vmax.f32 %v382, 0.0
    %v404 = vmax.f32 %v384, 0.0
    %v405 = vmax.f32 %v387, 0.0
    %v406 = vmax.f32 %v389, 0.0
    %v407 = vpack.c.bf16 %v392, %v391
    %v408 = vpack.c.bf16 %v394, %v393
    %v409 = vpack.c.bf16 %v396, %v395
    %v410 = vpack.c.bf16 %v398, %v397
    %v411 = vpack.c.bf16 %v400, %v399
    %v412 = vpack.c.bf16 %v402, %v401
    %v413 = vpack.c.bf16 %v404, %v403
    %v414 = vpack.c.bf16 %v406, %v405
    %v415 = vld [vmem:[#allocation6] sm:$0xf]
    %v416 = vld [vmem:[#allocation6 + $0x4] sm:$0xf]
    %v417 = vld [vmem:[#allocation6 + $0x8] sm:$0xf]
    %v418 = vld [vmem:[#allocation6 + $0xc] sm:$0xf]
    %v419 = vld [vmem:[#allocation6 + $0x10] sm:$0xf]
    %v420 = vld [vmem:[#allocation6 + $0x14] sm:$0xf]
    %v421 = vld [vmem:[#allocation6 + $0x18] sm:$0xf]
    %v422 = vld [vmem:[#allocation6 + $0x1c] sm:$0xf]
    %v423 = vld [vmem:[#allocation6 + $0x20] sm:$0xf]
    %v424 = vld [vmem:[#allocation6 + $0x24] sm:$0xf]
    %v425 = vld [vmem:[#allocation6 + $0x28] sm:$0xf]
    %v426 = vld [vmem:[#allocation6 + $0x2c] sm:$0xf]
    %v427 = vld [vmem:[#allocation6 + $0x30] sm:$0xf]
    %v428 = vld [vmem:[#allocation6 + $0x34] sm:$0xf]
    %v429 = vld [vmem:[#allocation6 + $0x38] sm:$0xf]
    %v430 = vld [vmem:[#allocation6 + $0x3c] sm:$0xf]
    %v447 = vunpack.c.l.b16 %v415
    %v448 = vunpack.c.l.b16 %v416
    %v449 = vunpack.c.l.b16 %v417
    %v450 = vunpack.c.l.b16 %v418
    %v451 = vunpack.c.l.b16 %v419
    %v452 = vunpack.c.l.b16 %v420
    %v453 = vunpack.c.l.b16 %v421
    %v454 = vunpack.c.l.b16 %v422
    %v455 = vunpack.c.l.b16 %v423
    %v456 = vunpack.c.l.b16 %v424
    %v457 = vunpack.c.l.b16 %v425
    %v458 = vunpack.c.l.b16 %v426
    %v459 = vunpack.c.l.b16 %v427
    %v460 = vunpack.c.l.b16 %v428
    %v461 = vunpack.c.l.b16 %v429
    %v462 = vunpack.c.l.b16 %v430
    %v463 = vpack.c.b16 %v448, %v447
    %v464 = vpack.c.b16 %v450, %v449
    %v465 = vpack.c.b16 %v452, %v451
    %v466 = vpack.c.b16 %v454, %v453
    %v467 = vpack.c.b16 %v456, %v455
    %v468 = vpack.c.b16 %v458, %v457
    %v469 = vpack.c.b16 %v460, %v459
    %v470 = vpack.c.b16 %v462, %v461
    %479 = vmatpush.bf16.msra.mxu0 %v470
    %480 = vmatpush.bf16.msra.mxu0 %v469
    %481 = vmatpush.bf16.msra.mxu0 %v468
    %482 = vmatpush.bf16.msra.mxu0 %v467
    %483 = vmatpush.bf16.msra.mxu0 %v466
    %484 = vmatpush.bf16.msra.mxu0 %v465
    %485 = vmatpush.bf16.msra.mxu0 %v464
    %486 = vmatpush.bf16.msra.mxu0 %v463
    %487 = vmatmul.bf16.gmra.mxu0 %v407
    %v488 = vpop.f32.mrf.mxu0
    %v489 = vadd.f32 0.0, %v488
    %v490 = vpop.f32.mrf.mxu0
    %v491 = vadd.f32 0.0, %v490
    %492 = vmatmul.bf16.gmra.mxu0 %v408
    %v493 = vpop.f32.mrf.mxu0
    %v494 = vadd.f32 0.0, %v493
    %v495 = vpop.f32.mrf.mxu0
    %v496 = vadd.f32 0.0, %v495
    %497 = vmatmul.bf16.gmra.mxu0 %v409
    %v498 = vpop.f32.mrf.mxu0
    %v499 = vadd.f32 0.0, %v498
    %v500 = vpop.f32.mrf.mxu0
    %v501 = vadd.f32 0.0, %v500
    %502 = vmatmul.bf16.gmra.mxu0 %v410
    %v503 = vpop.f32.mrf.mxu0
    %v504 = vadd.f32 0.0, %v503
    %v505 = vpop.f32.mrf.mxu0
    %v506 = vadd.f32 0.0, %v505
    %507 = vmatmul.bf16.gmra.mxu0 %v411
    %v508 = vpop.f32.mrf.mxu0
    %v509 = vadd.f32 0.0, %v508
    %v510 = vpop.f32.mrf.mxu0
    %v511 = vadd.f32 0.0, %v510
    %512 = vmatmul.bf16.gmra.mxu0 %v412
    %v513 = vpop.f32.mrf.mxu0
    %v514 = vadd.f32 0.0, %v513
    %v515 = vpop.f32.mrf.mxu0
    %v516 = vadd.f32 0.0, %v515
    %517 = vmatmul.bf16.gmra.mxu0 %v413
    %v518 = vpop.f32.mrf.mxu0
    %v519 = vadd.f32 0.0, %v518
    %v520 = vpop.f32.mrf.mxu0
    %v521 = vadd.f32 0.0, %v520
    %522 = vmatmul.bf16.gmra.mxu0 %v414
    %v523 = vpop.f32.mrf.mxu0
    %v524 = vadd.f32 0.0, %v523
    %v525 = vpop.f32.mrf.mxu0
    %v526 = vadd.f32 0.0, %v525
    %527 = vdwg.mxu0
    %v528 = vpack.c.bf16 %v491, %v489
    %v529 = vpack.c.bf16 %v496, %v494
    %v530 = vpack.c.bf16 %v501, %v499
    %v531 = vpack.c.bf16 %v506, %v504
    %v532 = vpack.c.bf16 %v511, %v509
    %v533 = vpack.c.bf16 %v516, %v514
    %v534 = vpack.c.bf16 %v521, %v519
    %v535 = vpack.c.bf16 %v526, %v524
    %v536 = vld [vmem:[%s5] sm:$0x1]
    %v538 = vperm.slane %v536, 0
    %540 = vmatpush.bf16.msra.mxu0 %v535
    %541 = vmatpush.bf16.msra.mxu0 %v534
    %542 = vmatpush.bf16.msra.mxu0 %v533
    %543 = vmatpush.bf16.msra.mxu0 %v532
    %544 = vmatpush.bf16.msra.mxu0 %v531
    %545 = vmatpush.bf16.msra.mxu0 %v530
    %546 = vmatpush.bf16.msra.mxu0 %v529
    %547 = vmatpush.bf16.msra.mxu0 %v528
    %548 = vmatmul.bf16.gmra.mxu0 %v326
    %v549 = vpop.f32.mrf.mxu0
    %v550 = vadd.f32 %v538, %v549
    %v551 = vpop.f32.mrf.mxu0
    %v552 = vadd.f32 %v538, %v551
    %553 = vmatmul.bf16.gmra.mxu0 %v327
    %v554 = vpop.f32.mrf.mxu0
    %v555 = vadd.f32 %v538, %v554
    %v556 = vpop.f32.mrf.mxu0
    %v557 = vadd.f32 %v538, %v556
    %558 = vmatmul.bf16.gmra.mxu0 %v328
    %v559 = vpop.f32.mrf.mxu0
    %v560 = vadd.f32 %v538, %v559
    %v561 = vpop.f32.mrf.mxu0
    %v562 = vadd.f32 %v538, %v561
    %563 = vmatmul.bf16.gmra.mxu0 %v329
    %v564 = vpop.f32.mrf.mxu0
    %v565 = vadd.f32 %v538, %v564
    %v566 = vpop.f32.mrf.mxu0
    %v567 = vadd.f32 %v538, %v566
    %568 = vmatmul.bf16.gmra.mxu0 %v330
    %v569 = vpop.f32.mrf.mxu0
    %v570 = vadd.f32 %v538, %v569
    %v571 = vpop.f32.mrf.mxu0
    %v572 = vadd.f32 %v538, %v571
    %573 = vmatmul.bf16.gmra.mxu0 %v331
    %v574 = vpop.f32.mrf.mxu0
    %v575 = vadd.f32 %v538, %v574
    %v576 = vpop.f32.mrf.mxu0
    %v577 = vadd.f32 %v538, %v576
    %578 = vmatmul.bf16.gmra.mxu0 %v332
    %v579 = vpop.f32.mrf.mxu0
    %v580 = vadd.f32 %v538, %v579
    %v581 = vpop.f32.mrf.mxu0
    %v582 = vadd.f32 %v538, %v581
    %583 = vmatmul.bf16.gmra.mxu0 %v333
    %v584 = vpop.f32.mrf.mxu0
    %v585 = vadd.f32 %v538, %v584
    %v586 = vpop.f32.mrf.mxu0
    %v587 = vadd.f32 %v538, %v586
    %588 = vdwg.mxu0
    %589 = vst [vmem:[%s6] sm:$0xff] %v550
    %590 = vst [vmem:[%s6 + $0x8] sm:$0xff] %v552
    %591 = vst [vmem:[%s6 + $0x10] sm:$0xff] %v555
    %592 = vst [vmem:[%s6 + $0x18] sm:$0xff] %v557
    %593 = vst [vmem:[%s6 + $0x20] sm:$0xff] %v560
    %594 = vst [vmem:[%s6 + $0x28] sm:$0xff] %v562
    %595 = vst [vmem:[%s6 + $0x30] sm:$0xff] %v565
    %596 = vst [vmem:[%s6 + $0x38] sm:$0xff] %v567
    %597 = vst [vmem:[%s6 + $0x40] sm:$0xff] %v570
    %598 = vst [vmem:[%s6 + $0x48] sm:$0xff] %v572
    %599 = vst [vmem:[%s6 + $0x50] sm:$0xff] %v575
    %600 = vst [vmem:[%s6 + $0x58] sm:$0xff] %v577
    %601 = vst [vmem:[%s6 + $0x60] sm:$0xff] %v580
    %602 = vst [vmem:[%s6 + $0x68] sm:$0xff] %v582
    %603 = vst [vmem:[%s6 + $0x70] sm:$0xff] %v585
    %604 = vst [vmem:[%s6 + $0x78] sm:$0xff] %v587
    // Predicated region
    $region49: #{gcn_forward.1} parent=1 // pred_check
      _
    $region50: #{gcn_forward.1} parent=1 // pred_check_branch
      %606 = sbr.rel (0) target = $region52
    $region51: #{gcn_forward.1} parent=1 // pred_region
      _
    $region52: #{gcn_forward.1} parent=1 // pred_fallthru
      _
    // Predicated region
    $region53: #{gcn_forward.1} parent=1 // pred_check
      _
    $region54: #{gcn_forward.1} parent=1 // pred_check_branch
      %608 = sbr.rel (0) target = $region56
    $region55: #{gcn_forward.1} parent=1 // pred_region
      _
    $region56: #{gcn_forward.1} parent=1 // pred_fallthru
      _
    %609 = vsyncpa [#allocation5], 1
    %610 = vsyncpa [#allocation7], 1
  %611 = vsyncmov [#allocation3]
  %s612 = vpop.sfrf %611
  %p613 = scmp.eq.s32.totalorder %s612, 0
  %p614 = pneg %p613
  %616 = shalt.err (%p614)

</llo_original>
